<compile_context>
chip_gen: v7x
topology: tpu7x:2x2x1
jax: 0.10.0
libtpu: 0.0.40
codegen_flags: <defaults>
</compile_context>

<pallas_src>
import functools

import jax
import jax.numpy as jnp
from jax import lax
from jax.experimental import pallas as pl
from jax.experimental.pallas import tpu as pltpu


def _focal_loss_partial_kernel(preds_ref, targets_ref, partial_ref, *,
                               gamma, alpha, n_rows, block_rows, has_tail):
    i = pl.program_id(0)

    x = preds_ref[...].astype(jnp.float32)      # (block_rows, C)
    t = targets_ref[...].astype(jnp.float32)    # (block_rows, C)

    # One exp per element, shared between sigmoid and BCE-with-logits.
    e = jnp.exp(-jnp.abs(x))                            # EUP: exp
    inv = pl.reciprocal(1.0 + e, approx=True)           # EUP: near-free vrcp
    p = jnp.where(x >= 0.0, inv, e * inv)               # sigmoid(x)
    # numerically stable binary_cross_entropy_with_logits (reduction='none')
    ce = jnp.maximum(x, 0.0) - x * t + jnp.log1p(e)     # EUP: log1p

    p_t = p * t + (1.0 - p) * (1.0 - t)
    one_minus_pt = 1.0 - p_t
    if gamma == 2.0:                       # default: plain VPU multiply, no pow
        mod = one_minus_pt * one_minus_pt
    elif float(gamma).is_integer() and gamma >= 0.0:
        mod = lax.integer_pow(one_minus_pt, int(gamma))
    else:
        mod = one_minus_pt ** gamma
    loss = ce * mod

    if alpha >= 0:                         # matches the `if self.alpha >= 0` branch
        alpha_t = alpha * t + (1.0 - alpha) * (1.0 - t)
        loss = alpha_t * loss

    if has_tail:
        # Mask out-of-range (padded) rows of the last tile.
        row = lax.broadcasted_iota(jnp.int32, loss.shape, 0)
        loss = jnp.where(row < (n_rows - i * block_rows), loss, 0.0)

    # VPU-only row reduction: (block_rows, C) -> (8, C); the cross-lane reduce of the
    # tiny partial-sum array happens once in the wrapper, not per grid step.
    partial = loss.reshape(block_rows // 8, 8, loss.shape[-1]).sum(axis=0)
    partial_ref[0] = partial


def focal_loss_pallas(preds, targets, *, gamma=2.0, alpha=0.25,
                      reduction="mean", block_rows=512):
    """Sigmoid focal loss (mean/sum-reduced) computed in a Pallas TPU kernel.

    `targets` may be f32 / bf16 / int8 binary labels (cast to f32 in-kernel).
    """
    assert preds.shape == targets.shape
    assert preds.ndim == 2
    assert reduction in ("mean", "sum"), "reduction='none' not implemented"
    # TODO(synk): reduction='none' (full per-element output) and the legacy
    # forward_old softmax path are not implemented; forward() only uses this path.

    B, C = preds.shape
    n_elems = B * C

    # Size the batch tile: <= block_rows, <= ~1 MiB per input tile (keeps the
    # double-buffered VMEM footprint ~4 MiB even for very large C, v7x-safe),
    # a multiple of 8, and no larger than the 8-rounded batch.
    bytes_per_row = C * 4
    max_rows_vmem = max(8, (1 << 20) // bytes_per_row)
    br = max(8, (min(block_rows, max_rows_vmem) // 8) * 8)
    padded_B = ((B + 7) // 8) * 8
    br = min(br, padded_B)

    num_blocks = pl.cdiv(B, br)
    has_tail = (num_blocks * br) != B

    kernel = functools.partial(
        _focal_loss_partial_kernel, gamma=gamma, alpha=alpha,
        n_rows=B, block_rows=br, has_tail=has_tail)

    partials = pl.pallas_call(
        kernel,
        out_shape=jax.ShapeDtypeStruct((num_blocks, 8, C), jnp.float32),
        grid_spec=pltpu.PrefetchScalarGridSpec(
            num_scalar_prefetch=0,
            grid=(num_blocks,),
            in_specs=[
                pl.BlockSpec((br, C), lambda i: (i, 0)),
                pl.BlockSpec((br, C), lambda i: (i, 0)),
            ],
            out_specs=pl.BlockSpec((1, 8, C), lambda i: (i, 0, 0)),
        ),
        compiler_params=pltpu.CompilerParams(
            dimension_semantics=("parallel",)),   # megacore-shardable on v7x
    )(preds, targets)

    total = jnp.sum(partials)
    if reduction == "mean":
        return total / jnp.float32(n_elems)
    return total


def focal_loss_ref(preds, targets, *, gamma=2.0, alpha=0.25):
    """Pure-JAX reference matching the PyTorch sigmoid_focal_loss (mean)."""
    x = preds.astype(jnp.float32)
    t = targets.astype(jnp.float32)
    p = jax.nn.sigmoid(x)
    ce = jnp.maximum(x, 0.0) - x * t + jnp.log1p(jnp.exp(-jnp.abs(x)))
    p_t = p * t + (1.0 - p) * (1.0 - t)
    loss = ce * (1.0 - p_t) ** gamma
    alpha_t = alpha * t + (1.0 - alpha) * (1.0 - t)
    loss = alpha_t * loss
    return jnp.mean(loss)


if __name__ == "__main__":
    # FocalLoss(num_labels=128) on logits [batch=16, num_labels=128]
    num_labels = 128
    batch = 16

    key = jax.random.PRNGKey(0)
    k_preds, k_tgt, k_preds2, k_tgt2 = jax.random.split(key, 4)
    preds = jax.random.normal(k_preds, (batch, num_labels), dtype=jnp.float32)
    targets = (jax.random.uniform(k_tgt, (batch, num_labels)) > 0.5).astype(jnp.float32)

    loss = focal_loss_pallas(preds, targets, gamma=2.0, alpha=0.25)
    loss = jax.block_until_ready(loss)
    ref = focal_loss_ref(preds, targets, gamma=2.0, alpha=0.25)
    # approx=True reciprocal => slightly looser tolerance than exact f32.
    assert jnp.allclose(loss, ref, rtol=1e-3, atol=1e-6), (loss, ref)

    # Second check: ragged batch (tail masking) + int8 binary targets (bandwidth path).
    batch2 = 50
    preds2 = jax.random.normal(k_preds2, (batch2, num_labels), dtype=jnp.float32)
    targets2_f = (jax.random.uniform(k_tgt2, (batch2, num_labels)) > 0.5).astype(jnp.float32)
    targets2_i8 = targets2_f.astype(jnp.int8)

    loss2 = focal_loss_pallas(preds2, targets2_i8, gamma=2.0, alpha=0.25)
    loss2 = jax.block_until_ready(loss2)
    ref2 = focal_loss_ref(preds2, targets2_f, gamma=2.0, alpha=0.25)
    assert jnp.allclose(loss2, ref2, rtol=1e-3, atol=1e-6), (loss2, ref2)

    print("KERNEL_OK")
</pallas_src>

<mosaic_0001>
module attributes {stable_mosaic.version = 11 : i64} {
  func.func @_focal_loss_partial_kernel(%arg0: i32, %arg1: memref<16x128xf32, #tpu.memory_space<vmem>>, %arg2: memref<16x128xf32, #tpu.memory_space<vmem>>, %arg3: memref<1x8x128xf32, #tpu.memory_space<vmem>>) attributes {dimension_semantics = [#tpu.dimension_semantics<parallel>], iteration_bounds = array<i64: 1>, scalar_prefetch = 0 : i64, scratch_operands = 0 : i64, tpu.core_type = #tpu.core_type<tc>, window_params = [{transform_indices = @transform_0, window_bounds = array<i64: 16, 128>}, {transform_indices = @transform_1, window_bounds = array<i64: 16, 128>}, {transform_indices = @transform_2, window_bounds = array<i64: 1, 8, 128>}]} {
    %c0 = arith.constant 0 : index
    %c0_0 = arith.constant 0 : index
    %0 = vector.load %arg1[%c0, %c0_0] : memref<16x128xf32, #tpu.memory_space<vmem>>, vector<16x128xf32>
    %c0_1 = arith.constant 0 : index
    %c0_2 = arith.constant 0 : index
    %1 = vector.load %arg2[%c0_1, %c0_2] : memref<16x128xf32, #tpu.memory_space<vmem>>, vector<16x128xf32>
    %2 = math.absf %0 : vector<16x128xf32>
    %cst = arith.constant 0.000000e+00 : f32
    %3 = vector.broadcast %cst : f32 to vector<16x128xf32>
    %4 = arith.subf %3, %2 : vector<16x128xf32>
    %5 = math.exp %4 : vector<16x128xf32>
    %cst_3 = arith.constant 1.000000e+00 : f32
    %6 = vector.broadcast %cst_3 : f32 to vector<16x128xf32>
    %7 = arith.addf %6, %5 : vector<16x128xf32>
    %8 = tpu.reciprocal %7 {approx = true} : vector<16x128xf32> -> vector<16x128xf32>
    %cst_4 = arith.constant 0.000000e+00 : f32
    %9 = vector.broadcast %cst_4 : f32 to vector<16x128xf32>
    %10 = arith.cmpf oge, %0, %9 : vector<16x128xf32>
    %11 = arith.mulf %5, %8 : vector<16x128xf32>
    %12 = arith.select %10, %8, %11 : vector<16x128xi1>, vector<16x128xf32>
    %cst_5 = arith.constant 0.000000e+00 : f32
    %13 = vector.broadcast %cst_5 : f32 to vector<16x128xf32>
    %14 = arith.maximumf %0, %13 : vector<16x128xf32>
    %15 = arith.mulf %0, %1 : vector<16x128xf32>
    %16 = arith.subf %14, %15 : vector<16x128xf32>
    %17 = math.log1p %5 : vector<16x128xf32>
    %18 = arith.addf %16, %17 : vector<16x128xf32>
    %19 = arith.mulf %12, %1 : vector<16x128xf32>
    %cst_6 = arith.constant 1.000000e+00 : f32
    %20 = vector.broadcast %cst_6 : f32 to vector<16x128xf32>
    %21 = arith.subf %20, %12 : vector<16x128xf32>
    %cst_7 = arith.constant 1.000000e+00 : f32
    %22 = vector.broadcast %cst_7 : f32 to vector<16x128xf32>
    %23 = arith.subf %22, %1 : vector<16x128xf32>
    %24 = arith.mulf %21, %23 : vector<16x128xf32>
    %25 = arith.addf %19, %24 : vector<16x128xf32>
    %cst_8 = arith.constant 1.000000e+00 : f32
    %26 = vector.broadcast %cst_8 : f32 to vector<16x128xf32>
    %27 = arith.subf %26, %25 : vector<16x128xf32>
    %28 = arith.mulf %27, %27 : vector<16x128xf32>
    %29 = arith.mulf %18, %28 : vector<16x128xf32>
    %cst_9 = arith.constant 2.500000e-01 : f32
    %30 = vector.broadcast %cst_9 : f32 to vector<16x128xf32>
    %31 = arith.mulf %30, %1 : vector<16x128xf32>
    %cst_10 = arith.constant 1.000000e+00 : f32
    %32 = vector.broadcast %cst_10 : f32 to vector<16x128xf32>
    %33 = arith.subf %32, %1 : vector<16x128xf32>
    %cst_11 = arith.constant 7.500000e-01 : f32
    %34 = vector.broadcast %cst_11 : f32 to vector<16x128xf32>
    %35 = arith.mulf %34, %33 : vector<16x128xf32>
    %36 = arith.addf %31, %35 : vector<16x128xf32>
    %37 = arith.mulf %36, %29 : vector<16x128xf32>
    %38 = vector.shape_cast %37 : vector<16x128xf32> to vector<2x8x128xf32>
    %cst_12 = arith.constant dense<0.000000e+00> : vector<8x128xf32>
    %39 = vector.multi_reduction <add>, %38, %cst_12 [0] : vector<2x8x128xf32> to vector<8x128xf32>
    %c0_13 = arith.constant 0 : index
    %c0_14 = arith.constant 0 : index
    %c0_15 = arith.constant 0 : index
    %40 = vector.load %arg3[%c0_13, %c0_14, %c0_15] : memref<1x8x128xf32, #tpu.memory_space<vmem>>, vector<1x8x128xf32>
    %41 = vector.shape_cast %40 : vector<1x8x128xf32> to vector<8x128xf32>
    %42 = vector.shape_cast %39 : vector<8x128xf32> to vector<1x8x128xf32>
    tpu.vector_store %arg3[%c0_13, %c0_14, %c0_15], %42 {strides = array<i32>} : memref<1x8x128xf32, #tpu.memory_space<vmem>>, vector<1x8x128xf32>,
    return
  }
  func.func @transform_0(%arg0: i32) -> (i32, i32) {
    %c0_i32 = arith.constant 0 : i32
    %c0_i32_0 = arith.constant 0 : i32
    return %arg0, %c0_i32 : i32, i32
  }
  func.func @transform_1(%arg0: i32) -> (i32, i32) {
    %c0_i32 = arith.constant 0 : i32
    %c0_i32_0 = arith.constant 0 : i32
    return %arg0, %c0_i32 : i32, i32
  }
  func.func @transform_2(%arg0: i32) -> (i32, i32, i32) {
    %c0_i32 = arith.constant 0 : i32
    %c0_i32_0 = arith.constant 0 : i32
    %c0_i32_1 = arith.constant 0 : i32
    return %arg0, %c0_i32, %c0_i32_0 : i32, i32, i32
  }
}

</mosaic_0001>

<llo_original>
// kernel: tpu_custom_call.1
$region0: #{tpu_custom_call.1}
  #allocation0 [shape = 'u32[]', space=smem, size = 0x4, offset = 0x4, fixed_abs, tag = 'smem constant byte address 0x4 - core index']
  #allocation1 [shape = 'u32[144,128]{1,0:T(1,128)}', space=vmem, size = 0x12000, scoped, tag = 'internal scratch']
  %s0 = inlined_call_operand.hbm [shape: f32[16,128], index: 0, kind: input, shape index: {}]
  %s1 = inlined_call_operand.hbm [shape: f32[16,128], index: 1, kind: input, shape index: {}]
  %s2 = inlined_call_operand.hbm [shape: f32[1,8,128], index: 2, kind: output, shape index: {}]
  %s3 = sld [smem:[#allocation0]]
  $region26: #{tpu_custom_call.1} parent=0
    _
  %s5 = ssub.s32 1, %s3
  %s6 = scalar_select 0, %s5, %s3
  $region1: #{tpu_custom_call.1} parent=0
    #allocation2 [shape = 'u8[8192]{0}', space=vmem, size = 0x2000, scoped, tag = 'input window, operand 0, single buffered']
    #allocation3 [shape = 's32[1]{0}', space=sflag, size = 0x4, scoped, tag = 'scoped memory for tpu_custom_call.1']
    #allocation4 [shape = 's32[1]{0}', space=sflag, size = 0x4, scoped, tag = 'scoped memory for tpu_custom_call.1']
    #allocation5 [shape = 'u8[8192]{0}', space=vmem, size = 0x2000, scoped, tag = 'input window, operand 1, single buffered']
    #allocation6 [shape = 's32[1]{0}', space=sflag, size = 0x4, scoped, tag = 'scoped memory for tpu_custom_call.1']
    #allocation7 [shape = 'u8[4096]{0}', space=vmem, size = 0x1000, scoped, tag = 'output window, operand 0, single buffered']
    %7 = vsyncpa [#allocation3], 0
    %8 = vsyncpa [#allocation6], 0
    %9 = vsyncpa [#allocation4], 0
    // Predicated region
    $region2: #{tpu_custom_call.1} parent=1 // pred_check
      _
    $region3: #{tpu_custom_call.1} parent=1 // pred_check_branch
      %11 = sbr.rel (0) target = $region5
    $region4: #{tpu_custom_call.1} parent=1 // pred_region
      %s13 = ssub.s32 256, 256
      %14 = vsyncadd [#allocation3], %s13
      %s15 = sshll.u32 [#allocation2], 4
      %s16 = int_to_ptr.vmem [resolvable:$true] %s15
      %21 = dma.hbm_to_vmem [thread:$0]  %s0, 256, %s16, [#allocation3], 128, 128, 8
    $region5: #{tpu_custom_call.1} parent=1 // pred_fallthru
      _
    // Predicated region
    $region6: #{tpu_custom_call.1} parent=1 // pred_check
      _
    $region7: #{tpu_custom_call.1} parent=1 // pred_check_branch
      %23 = sbr.rel (0) target = $region9
    $region8: #{tpu_custom_call.1} parent=1 // pred_region
      %s25 = ssub.s32 256, 256
      %26 = vsyncadd [#allocation6], %s25
      %s27 = sshll.u32 [#allocation5], 4
      %s28 = int_to_ptr.vmem [resolvable:$true] %s27
      %33 = dma.hbm_to_vmem [thread:$0]  %s1, 256, %s28, [#allocation6], 128, 128, 8
    $region9: #{tpu_custom_call.1} parent=1 // pred_fallthru
      _
    // Predicated region
    $region10: #{tpu_custom_call.1} parent=1 // pred_check
      _
    $region11: #{tpu_custom_call.1} parent=1 // pred_check_branch
      %35 = sbr.rel (0) target = $region13
    $region12: #{tpu_custom_call.1} parent=1 // pred_region
      %36 = dma.done [#allocation3], 256
    $region13: #{tpu_custom_call.1} parent=1 // pred_fallthru
      _
    // Predicated region
    $region14: #{tpu_custom_call.1} parent=1 // pred_check
      _
    $region15: #{tpu_custom_call.1} parent=1 // pred_check_branch
      %38 = sbr.rel (0) target = $region17
    $region16: #{tpu_custom_call.1} parent=1 // pred_region
      %39 = dma.done [#allocation6], 256
    $region17: #{tpu_custom_call.1} parent=1 // pred_fallthru
      _
    %v40 = vld [vmem:[#allocation2] sm:$0xff]
    %v41 = vld [vmem:[#allocation2 + $0x8] sm:$0xff]
    %v42 = vld [vmem:[#allocation5] sm:$0xff]
    %v43 = vld [vmem:[#allocation5 + $0x8] sm:$0xff]
    %v44 = vand.u32 2147483647, %v40
    %v45 = vand.u32 2147483647, %v41
    %v46 = vsub.f32 0.0, %v44
    %v47 = vsub.f32 0.0, %v45
    %v48 = vmul.f32 %v46, 1.442695
    %v49 = vpow.pop %v48
    %v50 = vmul.f32 %v47, 1.442695
    %v51 = vpow.pop %v50
    %v52 = vadd.f32 %v49, 1.0
    %v53 = vadd.f32 %v51, 1.0
    %v54 = vrcp.pop %v52
    %v55 = vrcp.pop %v53
    %vm56 = vcmp.ge.f32.partialorder %v40, 0.0
    %vm57 = vcmp.ge.f32.partialorder %v41, 0.0
    %v58 = vmul.f32 %v49, %v54
    %v59 = vmul.f32 %v51, %v55
    %v60 = vsel %vm56, %v54, %v58
    %v61 = vsel %vm57, %v55, %v59
    %v62 = vmax.f32 %v40, 0.0
    %v63 = vmax.f32 %v41, 0.0
    %v64 = vmul.f32 %v40, %v42
    %v65 = vmul.f32 %v41, %v43
    %v66 = vsub.f32 %v62, %v64
    %v67 = vsub.f32 %v63, %v65
    %v68 = vadd.f32 %v49, 1.0
    %v69 = vlog2.pop %v68
    %v70 = vmul.f32 %v69, 0.6931472
    %v71 = vmul.f32 -0.5, %v49
    %v72 = vadd.f32 %v71, 1.0
    %v73 = vmul.f32 %v72, %v49
    %v74 = vand.u32 2147483647, %v49
    %vm75 = vcmp.lt.f32.partialorder %v74, 0.0004427343
    %v76 = vsel %vm75, %v73, %v70
    %v77 = vadd.f32 %v51, 1.0
    %v78 = vlog2.pop %v77
    %v79 = vmul.f32 %v78, 0.6931472
    %v80 = vmul.f32 -0.5, %v51
    %v81 = vadd.f32 %v80, 1.0
    %v82 = vmul.f32 %v81, %v51
    %v83 = vand.u32 2147483647, %v51
    %vm84 = vcmp.lt.f32.partialorder %v83, 0.0004427343
    %v85 = vsel %vm84, %v82, %v79
    %v86 = vadd.f32 %v66, %v76
    %v87 = vadd.f32 %v67, %v85
    %v88 = vmul.f32 %v60, %v42
    %v89 = vmul.f32 %v61, %v43
    %v90 = vsub.f32 1.0, %v60
    %v91 = vsub.f32 1.0, %v61
    %v92 = vsub.f32 1.0, %v42
    %v93 = vsub.f32 1.0, %v43
    %v94 = vmul.f32 %v90, %v92
    %v95 = vmul.f32 %v91, %v93
    %v96 = vadd.f32 %v88, %v94
    %v97 = vadd.f32 %v89, %v95
    %v98 = vsub.f32 1.0, %v96
    %v99 = vsub.f32 1.0, %v97
    %v100 = vmul.f32 %v98, %v98
    %v101 = vmul.f32 %v99, %v99
    %v102 = vmul.f32 %v86, %v100
    %v103 = vmul.f32 %v87, %v101
    %v104 = vmul.f32 %v42, 0.25
    %v105 = vmul.f32 %v43, 0.25
    %v106 = vmul.f32 %v92, 0.75
    %v107 = vmul.f32 %v93, 0.75
    %v108 = vadd.f32 %v104, %v106
    %v109 = vadd.f32 %v105, %v107
    %v110 = vmul.f32 %v108, %v102
    %v111 = vmul.f32 %v109, %v103
    %v112 = vadd.f32 %v110, %v111
    %113 = vst [vmem:[#allocation7] sm:$0xff] %v112
    // Predicated region
    $region18: #{tpu_custom_call.1} parent=1 // pred_check
      _
    $region19: #{tpu_custom_call.1} parent=1 // pred_check_branch
      %115 = sbr.rel (0) target = $region21
    $region20: #{tpu_custom_call.1} parent=1 // pred_region
      %s117 = ssub.s32 128, 128
      %118 = vsyncadd [#allocation4], %s117
      %s120 = sshll.u32 [#allocation7], 4
      %s121 = int_to_ptr.vmem [resolvable:$true] %s120
      %123 = dma.vmem_to_hbm [thread:$0]  %s121, 128, %s2, [#allocation4]
    $region21: #{tpu_custom_call.1} parent=1 // pred_fallthru
      _
    // Predicated region
    $region22: #{tpu_custom_call.1} parent=1 // pred_check
      _
    $region23: #{tpu_custom_call.1} parent=1 // pred_check_branch
      %125 = sbr.rel (0) target = $region25
    $region24: #{tpu_custom_call.1} parent=1 // pred_region
      %126 = dma.done [#allocation4], 128
    $region25: #{tpu_custom_call.1} parent=1 // pred_fallthru
      _
    %127 = vsyncpa [#allocation3], 1
    %128 = vsyncpa [#allocation6], 1
    %129 = vsyncpa [#allocation4], 1

</llo_original>
